<compile_context>
chip_gen: v7x
topology: tpu7x:2x2x1
jax: 0.10.0
libtpu: 0.0.40
codegen_flags: <defaults>
</compile_context>

<pallas_src>
import jax
import jax.numpy as jnp
from jax.experimental import pallas as pl
from jax.experimental.pallas import tpu as pltpu

IN_F, H1, H2, H3, OUT_F = 29, 25, 20, 15, 10

LANES = 128           # every slab section spans the full lane width
K0 = 32               # x feature dim padded 29 -> 32 (2 zero cols + 1 const-one col)
X_CONST_COL = K0 - 1  # x[:, 31] == 1.0 drives the folded fc1 bias
CONST_LANE = 127      # lane carrying the constant 1.0 through h1..h3 (folded biases)

# Packed parameter slab layout (rows x 128 lanes, f32). Every section starts on
# an 8-row (sublane) boundary and spans all 128 lanes -> tile-aligned slices.
_W1_R, _W1_ROWS = 0, 32      # rows 0..28 = fc1.W^T, row 31 = fc1.b (+const passthrough)
_W2_R, _W2_ROWS = 32, 128    # rows 0..24 = fc2.W^T, row 127 = fc2.b (+const passthrough)
_W3_R, _W3_ROWS = 160, 128   # rows 0..19 = fc3.W^T, row 127 = fc3.b (+const passthrough)
_W4_R, _W4_ROWS = 288, 128   # rows 0..14 = fc4.W^T, row 127 = fc4.b
SLAB_ROWS = 416              # 416 x 128 x 4 B = 208 KiB, DMA'd once (constant index_map)

DEFAULT_TILE_M = 4096  # fits default scoped VMEM on v5e/v6e/v7x incl. double-buffering


def _round_up(n, m):
    return ((n + m - 1) // m) * m


def pack_params(params):
    """Pack fc1..fc4 weights AND biases into one tile-aligned VMEM-resident slab.

    Biases are folded into the last row of each section; a constant-one lane
    (CONST_LANE) is propagated through the hidden layers so every layer is a
    single matmul with no separate bias add.
    """
    slab = jnp.zeros((SLAB_ROWS, LANES), jnp.float32)
    # fc1: contraction dim is the 32-wide padded x; x[:,31] == 1 supplies the bias.
    slab = slab.at[_W1_R:_W1_R + IN_F, :H1].set(params["w1"])
    slab = slab.at[_W1_R + X_CONST_COL, :H1].set(params["b1"].reshape(-1))
    slab = slab.at[_W1_R + X_CONST_COL, CONST_LANE].set(1.0)   # h1[CONST_LANE] = 1
    # fc2
    slab = slab.at[_W2_R:_W2_R + H1, :H2].set(params["w2"])
    slab = slab.at[_W2_R + CONST_LANE, :H2].set(params["b2"].reshape(-1))
    slab = slab.at[_W2_R + CONST_LANE, CONST_LANE].set(1.0)    # h2[CONST_LANE] = 1
    # fc3
    slab = slab.at[_W3_R:_W3_R + H2, :H3].set(params["w3"])
    slab = slab.at[_W3_R + CONST_LANE, :H3].set(params["b3"].reshape(-1))
    slab = slab.at[_W3_R + CONST_LANE, CONST_LANE].set(1.0)    # h3[CONST_LANE] = 1
    # fc4 (last layer: constant lane not propagated further)
    slab = slab.at[_W4_R:_W4_R + H3, :OUT_F].set(params["w4"])
    slab = slab.at[_W4_R + CONST_LANE, :OUT_F].set(params["b4"].reshape(-1))
    return slab


def _mlp_kernel(x_ref, slab_ref, o_ref):
    x = x_ref[...]                                    # (tm, 32); lane 31 is the constant 1

    # Tile-aligned per-section ref slices: 8-row-aligned starts, full 128 lanes.
    # Only the needed rows are loaded; no whole-slab materialization, no relayout.
    w1 = slab_ref[_W1_R:_W1_R + _W1_ROWS, :]          # (32, 128)
    w2 = slab_ref[_W2_R:_W2_R + _W2_ROWS, :]          # (128, 128)
    w3 = slab_ref[_W3_R:_W3_R + _W3_ROWS, :]          # (128, 128)
    w4 = slab_ref[_W4_R:_W4_R + _W4_ROWS, :]          # (128, 128)

    # Biases are folded into the weights via the constant-one lane, so each
    # layer is a single native-shape MXU matmul followed by relu. Zero pad
    # lanes flow through matmul/relu as zeros.
    h = jnp.maximum(jnp.dot(x, w1, preferred_element_type=jnp.float32), 0.0)   # (tm, 128)
    h = jnp.maximum(jnp.dot(h, w2, preferred_element_type=jnp.float32), 0.0)
    h = jnp.maximum(jnp.dot(h, w3, preferred_element_type=jnp.float32), 0.0)
    # TODO(synk): nn.Dropout(p=0.2) is the identity in eval/inference mode;
    # training-mode dropout would use pltpu.prng_seed / pltpu.prng_random_bits.
    logits = jnp.dot(h, w4, preferred_element_type=jnp.float32)                # lanes 10..127 are 0

    # Numerically stable log_softmax over the 10 real classes only: the 118 zero
    # pad lanes MUST be excluded (exp(0)=1 would corrupt the sum).
    lane = jax.lax.broadcasted_iota(jnp.int32, logits.shape, 1)
    masked = jnp.where(lane < OUT_F, logits, -jnp.inf)
    m = jnp.max(masked, axis=-1, keepdims=True)
    shifted = masked - m
    lse = jnp.log(jnp.sum(jnp.exp(shifted), axis=-1, keepdims=True))
    o_ref[...] = (shifted - lse)[:, :OUT_F].astype(o_ref.dtype)


def classifier_forward(x, slab, *, tile_m=DEFAULT_TILE_M, vmem_limit_bytes=None):
    """x: (B, 29) float32 (or (B, ...) flattened to 29).  slab: pack_params(...).

    tile_m: batch tile upper bound. 4096 fits default scoped VMEM everywhere;
            on v5e/v6e you can pass tile_m=8192 together with
            vmem_limit_bytes=64<<20 for large batches.
    """
    B = x.shape[0]
    x2d = x.reshape(B, -1).astype(jnp.float32)        # mirrors x.view(x.shape[0], -1)
    assert x2d.shape[1] == IN_F, f"expected {IN_F} features, got {x2d.shape[1]}"

    # Pick a sublane-aligned tile that divides the (lightly) padded batch
    # exactly: batch pad waste is < 8 rows per grid step, not up to tm-1 rows.
    tile_m = max(8, (tile_m // 8) * 8)
    b8 = _round_up(B, 8)
    nsteps = -(-b8 // tile_m)                          # ceil
    tm = _round_up(-(-b8 // nsteps), 8)                # <= tile_m, multiple of 8
    b_pad = tm * nsteps

    # Single host-side prep copy: batch pad (<8 rows/step), K pad 29->32, and
    # the constant-one column that feeds the folded biases.
    xp = jnp.zeros((b_pad, K0), jnp.float32)
    xp = xp.at[:B, :IN_F].set(x2d)
    xp = xp.at[:, X_CONST_COL].set(1.0)

    cparams = dict(dimension_semantics=("parallel",))  # megacore sharding on v7x
    if vmem_limit_bytes is not None:
        cparams["vmem_limit_bytes"] = int(vmem_limit_bytes)

    out = pl.pallas_call(
        _mlp_kernel,
        out_shape=jax.ShapeDtypeStruct((b_pad, OUT_F), jnp.float32),
        grid=(nsteps,),
        in_specs=[
            pl.BlockSpec((tm, K0), lambda i: (i, 0)),               # streamed batch tile
            pl.BlockSpec((SLAB_ROWS, LANES), lambda i: (0, 0)),     # weights: VMEM-resident
        ],
        out_specs=pl.BlockSpec((tm, OUT_F), lambda i: (i, 0)),
        compiler_params=pltpu.CompilerParams(**cparams),
    )(xp, slab)
    return out[:B] if b_pad != B else out


def init_params(key):
    """Deterministic init matching the nn.Linear shapes (stored as (in, out))."""
    sizes = [(IN_F, H1), (H1, H2), (H2, H3), (H3, OUT_F)]
    params = {}
    for i, (fan_in, fan_out) in enumerate(sizes, start=1):
        key, kw, kb = jax.random.split(key, 3)
        bound = 1.0 / jnp.sqrt(fan_in)
        params[f"w{i}"] = jax.random.uniform(
            kw, (fan_in, fan_out), jnp.float32, -bound, bound)
        params[f"b{i}"] = jax.random.uniform(
            kb, (1, fan_out), jnp.float32, -bound, bound)
    return params


def _reference(x, p):
    h = jnp.maximum(x.reshape(x.shape[0], -1) @ p["w1"] + p["b1"], 0.0)
    h = jnp.maximum(h @ p["w2"] + p["b2"], 0.0)
    h = jnp.maximum(h @ p["w3"] + p["b3"], 0.0)
    logits = h @ p["w4"] + p["b4"]
    return jax.nn.log_softmax(logits, axis=1)


if __name__ == "__main__":
    key = jax.random.PRNGKey(0)
    kx, kp, kx2, kx3 = jax.random.split(key, 4)
    params = init_params(kp)
    slab = pack_params(params)

    # Small single-tile case (module's natural input shape).
    B = 8
    x = jax.random.uniform(kx, (B, IN_F), jnp.float32)  # min-max scaled inputs in [0,1]
    out = jax.block_until_ready(classifier_forward(x, slab))
    ref = _reference(x, params)
    assert out.shape == (B, OUT_F)
    assert jnp.allclose(out, ref, atol=1e-5, rtol=1e-5), "mismatch vs JAX reference (B=8)"

    # Non-multiple-of-8 batch: exercises the <8-row batch pad + output slicing.
    B2 = 300
    x2 = jax.random.uniform(kx2, (B2, IN_F), jnp.float32)
    out2 = jax.block_until_ready(classifier_forward(x2, slab))
    ref2 = _reference(x2, params)
    assert out2.shape == (B2, OUT_F)
    assert jnp.allclose(out2, ref2, atol=1e-5, rtol=1e-5), "mismatch vs JAX reference (B=300)"

    # Multi-step grid with a batch that is NOT a multiple of the requested tile:
    # tile is auto-adjusted (256 here) so no full-tile padding is ever done.
    B3 = 1000
    x3 = jax.random.uniform(kx3, (B3, IN_F), jnp.float32)
    out3 = jax.block_until_ready(classifier_forward(x3, slab, tile_m=256))
    ref3 = _reference(x3, params)
    assert out3.shape == (B3, OUT_F)
    assert jnp.allclose(out3, ref3, atol=1e-5, rtol=1e-5), "mismatch vs JAX reference (B=1000)"

    print("KERNEL_OK")
</pallas_src>

<mosaic_0001>
module attributes {stable_mosaic.version = 11 : i64} {
  func.func @_mlp_kernel(%arg0: i32, %arg1: memref<8x32xf32, #tpu.memory_space<vmem>>, %arg2: memref<416x128xf32, #tpu.memory_space<vmem>>, %arg3: memref<8x10xf32, #tpu.memory_space<vmem>>) attributes {dimension_semantics = [#tpu.dimension_semantics<parallel>], iteration_bounds = array<i64: 1>, scalar_prefetch = 0 : i64, scratch_operands = 0 : i64, tpu.core_type = #tpu.core_type<tc>, window_params = [{transform_indices = @transform_0, window_bounds = array<i64: 8, 32>}, {pipeline_mode = #tpu.pipeline_mode<synchronous>, transform_indices = @transform_1, window_bounds = array<i64: 416, 128>}, {transform_indices = @transform_2, window_bounds = array<i64: 8, 10>}]} {
    %c0 = arith.constant 0 : index
    %c0_0 = arith.constant 0 : index
    %0 = vector.load %arg1[%c0, %c0_0] : memref<8x32xf32, #tpu.memory_space<vmem>>, vector<8x32xf32>
    %c0_1 = arith.constant 0 : index
    %c0_2 = arith.constant 0 : index
    %1 = vector.load %arg2[%c0_1, %c0_2] : memref<416x128xf32, #tpu.memory_space<vmem>>, vector<32x128xf32>
    %c32 = arith.constant 32 : index
    %c0_3 = arith.constant 0 : index
    %2 = vector.load %arg2[%c32, %c0_3] : memref<416x128xf32, #tpu.memory_space<vmem>>, vector<128x128xf32>
    %c160 = arith.constant 160 : index
    %c0_4 = arith.constant 0 : index
    %3 = vector.load %arg2[%c160, %c0_4] : memref<416x128xf32, #tpu.memory_space<vmem>>, vector<128x128xf32>
    %c288 = arith.constant 288 : index
    %c0_5 = arith.constant 0 : index
    %4 = vector.load %arg2[%c288, %c0_5] : memref<416x128xf32, #tpu.memory_space<vmem>>, vector<128x128xf32>
    %cst = arith.constant dense<0.000000e+00> : vector<8x128xf32>
    %5 = tpu.matmul %0, %1, %cst {dimension_numbers = #tpu.dot_dimension_numbers<[1], [0], [0], [1], [0, 0, 1, 1], [], []>} : vector<8x32xf32>, vector<32x128xf32>, vector<8x128xf32> -> vector<8x128xf32>
    %cst_6 = arith.constant 0.000000e+00 : f32
    %6 = vector.broadcast %cst_6 : f32 to vector<8x128xf32>
    %7 = arith.maximumf %5, %6 : vector<8x128xf32>
    %cst_7 = arith.constant dense<0.000000e+00> : vector<8x128xf32>
    %8 = tpu.matmul %7, %2, %cst_7 {dimension_numbers = #tpu.dot_dimension_numbers<[1], [0], [0], [1], [0, 0, 1, 1], [], []>} : vector<8x128xf32>, vector<128x128xf32>, vector<8x128xf32> -> vector<8x128xf32>
    %cst_8 = arith.constant 0.000000e+00 : f32
    %9 = vector.broadcast %cst_8 : f32 to vector<8x128xf32>
    %10 = arith.maximumf %8, %9 : vector<8x128xf32>
    %cst_9 = arith.constant dense<0.000000e+00> : vector<8x128xf32>
    %11 = tpu.matmul %10, %3, %cst_9 {dimension_numbers = #tpu.dot_dimension_numbers<[1], [0], [0], [1], [0, 0, 1, 1], [], []>} : vector<8x128xf32>, vector<128x128xf32>, vector<8x128xf32> -> vector<8x128xf32>
    %cst_10 = arith.constant 0.000000e+00 : f32
    %12 = vector.broadcast %cst_10 : f32 to vector<8x128xf32>
    %13 = arith.maximumf %11, %12 : vector<8x128xf32>
    %cst_11 = arith.constant dense<0.000000e+00> : vector<8x128xf32>
    %14 = tpu.matmul %13, %4, %cst_11 {dimension_numbers = #tpu.dot_dimension_numbers<[1], [0], [0], [1], [0, 0, 1, 1], [], []>} : vector<8x128xf32>, vector<128x128xf32>, vector<8x128xf32> -> vector<8x128xf32>
    %15 = tpu.iota {dimensions = array<i32: 1>} : vector<8x128xi32>
    %c10_i32 = arith.constant 10 : i32
    %16 = vector.broadcast %c10_i32 : i32 to vector<8x128xi32>
    %17 = arith.cmpi slt, %15, %16 : vector<8x128xi32>
    %cst_12 = arith.constant 0xFF800000 : f32
    %18 = vector.broadcast %cst_12 : f32 to vector<8x128xf32>
    %19 = arith.select %17, %14, %18 : vector<8x128xi1>, vector<8x128xf32>
    %cst_13 = arith.constant dense<0xFF800000> : vector<8xf32>
    %20 = vector.multi_reduction <maximumf>, %19, %cst_13 [1] : vector<8x128xf32> to vector<8xf32>
    %21 = vector.shape_cast %20 : vector<8xf32> to vector<8x1xf32>
    %22 = vector.broadcast %21 : vector<8x1xf32> to vector<8x128xf32>
    %23 = arith.subf %19, %22 : vector<8x128xf32>
    %24 = math.exp %23 : vector<8x128xf32>
    %cst_14 = arith.constant dense<0.000000e+00> : vector<8xf32>
    %25 = vector.multi_reduction <add>, %24, %cst_14 [1] : vector<8x128xf32> to vector<8xf32>
    %26 = vector.shape_cast %25 : vector<8xf32> to vector<8x1xf32>
    %27 = math.log %26 : vector<8x1xf32>
    %28 = vector.broadcast %27 : vector<8x1xf32> to vector<8x128xf32>
    %29 = arith.subf %23, %28 : vector<8x128xf32>
    %30 = vector.extract_strided_slice %29 {offsets = [0, 0], sizes = [8, 10], strides = [1, 1]} : vector<8x128xf32> to vector<8x10xf32>
    %c0_15 = arith.constant 0 : index
    %c0_16 = arith.constant 0 : index
    %31 = vector.load %arg3[%c0_15, %c0_16] : memref<8x10xf32, #tpu.memory_space<vmem>>, vector<8x10xf32>
    tpu.vector_store %arg3[%c0_15, %c0_16], %30 {strides = array<i32>} : memref<8x10xf32, #tpu.memory_space<vmem>>, vector<8x10xf32>,
    return
  }
  func.func @transform_0(%arg0: i32) -> (i32, i32) {
    %c0_i32 = arith.constant 0 : i32
    %c0_i32_0 = arith.constant 0 : i32
    return %arg0, %c0_i32 : i32, i32
  }
  func.func @transform_1(%arg0: i32) -> (i32, i32) {
    %c0_i32 = arith.constant 0 : i32
    %c0_i32_0 = arith.constant 0 : i32
    %c0_i32_1 = arith.constant 0 : i32
    return %c0_i32, %c0_i32_0 : i32, i32
  }
  func.func @transform_2(%arg0: i32) -> (i32, i32) {
    %c0_i32 = arith.constant 0 : i32
    %c0_i32_0 = arith.constant 0 : i32
    return %arg0, %c0_i32 : i32, i32
  }
}

</mosaic_0001>

<llo_original>
// kernel: tpu_custom_call.1
$region0: #{tpu_custom_call.1}
  #allocation0 [shape = 'u32[]', space=smem, size = 0x4, offset = 0x4, fixed_abs, tag = 'smem constant byte address 0x4 - core index']
  #allocation1 [shape = 'u32[144,128]{1,0:T(1,128)}', space=vmem, size = 0x12000, scoped, tag = 'internal scratch']
  %s0 = inlined_call_operand.hbm [shape: f32[8,32], index: 0, kind: input, shape index: {}]
  %s1 = inlined_call_operand.hbm [shape: f32[416,128], index: 1, kind: input, shape index: {}]
  %s2 = inlined_call_operand.hbm [shape: f32[8,10], index: 2, kind: output, shape index: {}]
  %s3 = sld [smem:[#allocation0]]
  $region26: #{tpu_custom_call.1} parent=0
    _
  %s5 = ssub.s32 1, %s3
  %s6 = scalar_select 0, %s5, %s3
  $region1: #{tpu_custom_call.1} parent=0
    #allocation2 [shape = 'u8[4096]{0}', space=vmem, size = 0x1000, scoped, tag = 'input window, operand 0, single buffered']
    #allocation3 [shape = 's32[1]{0}', space=sflag, size = 0x4, scoped, tag = 'scoped memory for tpu_custom_call.1']
    #allocation4 [shape = 's32[1]{0}', space=sflag, size = 0x4, scoped, tag = 'scoped memory for tpu_custom_call.1']
    #allocation5 [shape = 'u8[212992]{0}', space=vmem, size = 0x34000, scoped, tag = 'input window, operand 1, single buffered']
    #allocation6 [shape = 's32[1]{0}', space=sflag, size = 0x4, scoped, tag = 'scoped memory for tpu_custom_call.1']
    #allocation7 [shape = 'u8[4096]{0}', space=vmem, size = 0x1000, scoped, tag = 'output window, operand 0, single buffered']
    %7 = vsyncpa [#allocation3], 0
    %8 = vsyncpa [#allocation6], 0
    %9 = vsyncpa [#allocation4], 0
    // Predicated region
    $region2: #{tpu_custom_call.1} parent=1 // pred_check
      _
    $region3: #{tpu_custom_call.1} parent=1 // pred_check_branch
      %11 = sbr.rel (0) target = $region5
    $region4: #{tpu_custom_call.1} parent=1 // pred_region
      %s13 = ssub.s32 128, 128
      %14 = vsyncadd [#allocation3], %s13
      %s16 = sshll.u32 [#allocation2], 4
      %s17 = int_to_ptr.vmem [resolvable:$true] %s16
      %19 = dma.hbm_to_vmem [thread:$0]  %s0, 128, %s17, [#allocation3]
    $region5: #{tpu_custom_call.1} parent=1 // pred_fallthru
      _
    // Predicated region
    $region6: #{tpu_custom_call.1} parent=1 // pred_check
      _
    $region7: #{tpu_custom_call.1} parent=1 // pred_check_branch
      %21 = sbr.rel (0) target = $region9
    $region8: #{tpu_custom_call.1} parent=1 // pred_region
      %s23 = ssub.s32 6656, 6656
      %24 = vsyncadd [#allocation6], %s23
      %s25 = sshll.u32 [#allocation5], 4
      %s26 = int_to_ptr.vmem [resolvable:$true] %s25
      %31 = dma.hbm_to_vmem [thread:$0]  %s1, 6656, %s26, [#allocation6], 128, 128, 8
    $region9: #{tpu_custom_call.1} parent=1 // pred_fallthru
      _
    // Predicated region
    $region10: #{tpu_custom_call.1} parent=1 // pred_check
      _
    $region11: #{tpu_custom_call.1} parent=1 // pred_check_branch
      %33 = sbr.rel (0) target = $region13
    $region12: #{tpu_custom_call.1} parent=1 // pred_region
      %34 = dma.done [#allocation3], 128
    $region13: #{tpu_custom_call.1} parent=1 // pred_fallthru
      _
    // Predicated region
    $region14: #{tpu_custom_call.1} parent=1 // pred_check
      _
    $region15: #{tpu_custom_call.1} parent=1 // pred_check_branch
      %36 = sbr.rel (0) target = $region17
    $region16: #{tpu_custom_call.1} parent=1 // pred_region
      %37 = dma.done [#allocation6], 6656
    $region17: #{tpu_custom_call.1} parent=1 // pred_fallthru
      _
    %v38 = vld [vmem:[#allocation2] sm:$0xff]
    %v39 = vld [vmem:[#allocation5] sm:$0xff]
    %v40 = vld [vmem:[#allocation5 + $0x8] sm:$0xff]
    %v41 = vld [vmem:[#allocation5 + $0x10] sm:$0xff]
    %v42 = vld [vmem:[#allocation5 + $0x18] sm:$0xff]
    %v43 = vld [vmem:[#allocation5 + $0x20] sm:$0xff]
    %v44 = vld [vmem:[#allocation5 + $0x28] sm:$0xff]
    %v45 = vld [vmem:[#allocation5 + $0x30] sm:$0xff]
    %v46 = vld [vmem:[#allocation5 + $0x38] sm:$0xff]
    %v47 = vld [vmem:[#allocation5 + $0x40] sm:$0xff]
    %v48 = vld [vmem:[#allocation5 + $0x48] sm:$0xff]
    %v49 = vld [vmem:[#allocation5 + $0x50] sm:$0xff]
    %v50 = vld [vmem:[#allocation5 + $0x58] sm:$0xff]
    %v51 = vld [vmem:[#allocation5 + $0x60] sm:$0xff]
    %v52 = vld [vmem:[#allocation5 + $0x68] sm:$0xff]
    %v53 = vld [vmem:[#allocation5 + $0x70] sm:$0xff]
    %v54 = vld [vmem:[#allocation5 + $0x78] sm:$0xff]
    %v55 = vld [vmem:[#allocation5 + $0x80] sm:$0xff]
    %v56 = vld [vmem:[#allocation5 + $0x88] sm:$0xff]
    %v57 = vld [vmem:[#allocation5 + $0x90] sm:$0xff]
    %v58 = vld [vmem:[#allocation5 + $0x98] sm:$0xff]
    %v59 = vld [vmem:[#allocation5 + $0xa0] sm:$0xff]
    %v60 = vld [vmem:[#allocation5 + $0xa8] sm:$0xff]
    %v61 = vld [vmem:[#allocation5 + $0xb0] sm:$0xff]
    %v62 = vld [vmem:[#allocation5 + $0xb8] sm:$0xff]
    %v63 = vld [vmem:[#allocation5 + $0xc0] sm:$0xff]
    %v64 = vld [vmem:[#allocation5 + $0xc8] sm:$0xff]
    %v65 = vld [vmem:[#allocation5 + $0xd0] sm:$0xff]
    %v66 = vld [vmem:[#allocation5 + $0xd8] sm:$0xff]
    %v67 = vld [vmem:[#allocation5 + $0xe0] sm:$0xff]
    %v68 = vld [vmem:[#allocation5 + $0xe8] sm:$0xff]
    %v69 = vld [vmem:[#allocation5 + $0xf0] sm:$0xff]
    %v70 = vld [vmem:[#allocation5 + $0xf8] sm:$0xff]
    %v71 = vld [vmem:[#allocation5 + $0x100] sm:$0xff]
    %v72 = vld [vmem:[#allocation5 + $0x108] sm:$0xff]
    %v73 = vld [vmem:[#allocation5 + $0x110] sm:$0xff]
    %v74 = vld [vmem:[#allocation5 + $0x118] sm:$0xff]
    %v75 = vld [vmem:[#allocation5 + $0x120] sm:$0xff]
    %v76 = vld [vmem:[#allocation5 + $0x128] sm:$0xff]
    %v77 = vld [vmem:[#allocation5 + $0x130] sm:$0xff]
    %v78 = vld [vmem:[#allocation5 + $0x138] sm:$0xff]
    %v79 = vld [vmem:[#allocation5 + $0x140] sm:$0xff]
    %v80 = vld [vmem:[#allocation5 + $0x148] sm:$0xff]
    %v81 = vld [vmem:[#allocation5 + $0x150] sm:$0xff]
    %v82 = vld [vmem:[#allocation5 + $0x158] sm:$0xff]
    %v83 = vld [vmem:[#allocation5 + $0x160] sm:$0xff]
    %v84 = vld [vmem:[#allocation5 + $0x168] sm:$0xff]
    %v85 = vld [vmem:[#allocation5 + $0x170] sm:$0xff]
    %v86 = vld [vmem:[#allocation5 + $0x178] sm:$0xff]
    %v87 = vld [vmem:[#allocation5 + $0x180] sm:$0xff]
    %v88 = vld [vmem:[#allocation5 + $0x188] sm:$0xff]
    %v89 = vld [vmem:[#allocation5 + $0x190] sm:$0xff]
    %v90 = vld [vmem:[#allocation5 + $0x198] sm:$0xff]
    %vm91 = vcmask 261120
    %v93 = vsel %vm91, %v38, 0
    %95 = vmatprep.subr.mxu0 0.0
    %96 = vmatpush1.msra.mxu0 %v39
    %97 = vmatprep.subr.mxu0 0.0
    %98 = vmatpush1.msra.mxu0 %v40
    %99 = vmatprep.subr.mxu0 0.0
    %100 = vmatpush1.msra.mxu0 %v41
    %101 = vmatprep.subr.mxu0 0.0
    %102 = vmatpush1.msra.mxu0 %v42
    %103 = vmatprep.subr.mxu0 0.0
    %104 = vmatpush1.msra.mxu0 0.0
    %105 = vmatprep.subr.mxu0 0.0
    %106 = vmatpush1.msra.mxu0 0.0
    %107 = vmatprep.subr.mxu0 0.0
    %108 = vmatpush1.msra.mxu0 0.0
    %109 = vmatprep.subr.mxu0 0.0
    %110 = vmatpush1.msra.mxu0 0.0
    %111 = vmatprep.subr.mxu0 0.0
    %112 = vmatpush1.msra.mxu0 0.0
    %113 = vmatprep.subr.mxu0 0.0
    %114 = vmatpush1.msra.mxu0 0.0
    %115 = vmatprep.subr.mxu0 0.0
    %116 = vmatpush1.msra.mxu0 0.0
    %117 = vmatprep.subr.mxu0 0.0
    %118 = vmatpush1.msra.mxu0 0.0
    %119 = vmatprep.subr.mxu0 0.0
    %120 = vmatpush1.msra.mxu0 0.0
    %121 = vmatprep.subr.mxu0 0.0
    %122 = vmatpush1.msra.mxu0 0.0
    %123 = vmatprep.subr.mxu0 0.0
    %124 = vmatpush1.msra.mxu0 0.0
    %125 = vmatprep.subr.mxu0 0.0
    %126 = vmatpush1.msra.mxu0 0.0
    %127 = vmatprep.subr.mxu0 0.0
    %128 = vmatpush1.msra.mxu0 0.0
    %129 = vmatprep.subr.mxu0 0.0
    %130 = vmatpush1.msra.mxu0 0.0
    %131 = vmatprep.subr.mxu0 0.0
    %132 = vmatpush1.msra.mxu0 0.0
    %133 = vmatprep.subr.mxu0 0.0
    %134 = vmatpush1.msra.mxu0 0.0
    %135 = vmatprep.subr.mxu0 0.0
    %136 = vmatpush1.msra.mxu0 0.0
    %137 = vmatprep.subr.mxu0 0.0
    %138 = vmatpush1.msra.mxu0 0.0
    %139 = vmatprep.subr.mxu0 0.0
    %140 = vmatpush1.msra.mxu0 0.0
    %141 = vmatprep.subr.mxu0 0.0
    %142 = vmatpush1.msra.mxu0 0.0
    %143 = vmatprep.subr.mxu0 0.0
    %144 = vmatpush1.msra.mxu0 0.0
    %145 = vmatprep.subr.mxu0 0.0
    %146 = vmatpush1.msra.mxu0 0.0
    %147 = vmatprep.subr.mxu0 0.0
    %148 = vmatpush1.msra.mxu0 0.0
    %149 = vmatprep.subr.mxu0 0.0
    %150 = vmatpush1.msra.mxu0 0.0
    %151 = vmatprep.subr.mxu0 0.0
    %152 = vmatpush1.msra.mxu0 0.0
    %153 = vmatprep.subr.mxu0 0.0
    %154 = vmatpush1.msra.mxu0 0.0
    %155 = vmatprep.subr.mxu0 0.0
    %156 = vmatpush1.msra.mxu0 0.0
    %157 = vmatprep.subr.mxu0 0.0
    %158 = vmatpush1.msra.mxu0 0.0
    %159 = vmatprep.mubr.f32.mxu0 0.0
    %160 = vmatmul.mubr.f32.gmra.mrb[0].mxu0 %v93
    %v161 = vpop.f32.mrb[0].mxu0
    %v162 = vadd.f32 0.0, %v161
    %v163 = vpop.f32.mrb[0].mxu0
    %164 = vdwg.mxu0
    %v165 = vmax.f32 %v162, 0.0
    %166 = vmatprep.subr.mxu0 0.0
    %167 = vmatpush1.msra.mxu0 %v43
    %168 = vmatprep.subr.mxu0 0.0
    %169 = vmatpush1.msra.mxu0 %v44
    %170 = vmatprep.subr.mxu0 0.0
    %171 = vmatpush1.msra.mxu0 %v45
    %172 = vmatprep.subr.mxu0 0.0
    %173 = vmatpush1.msra.mxu0 %v46
    %174 = vmatprep.subr.mxu0 0.0
    %175 = vmatpush1.msra.mxu0 %v47
    %176 = vmatprep.subr.mxu0 0.0
    %177 = vmatpush1.msra.mxu0 %v48
    %178 = vmatprep.subr.mxu0 0.0
    %179 = vmatpush1.msra.mxu0 %v49
    %180 = vmatprep.subr.mxu0 0.0
    %181 = vmatpush1.msra.mxu0 %v50
    %182 = vmatprep.subr.mxu0 0.0
    %183 = vmatpush1.msra.mxu0 %v51
    %184 = vmatprep.subr.mxu0 0.0
    %185 = vmatpush1.msra.mxu0 %v52
    %186 = vmatprep.subr.mxu0 0.0
    %187 = vmatpush1.msra.mxu0 %v53
    %188 = vmatprep.subr.mxu0 0.0
    %189 = vmatpush1.msra.mxu0 %v54
    %190 = vmatprep.subr.mxu0 0.0
    %191 = vmatpush1.msra.mxu0 %v55
    %192 = vmatprep.subr.mxu0 0.0
    %193 = vmatpush1.msra.mxu0 %v56
    %194 = vmatprep.subr.mxu0 0.0
    %195 = vmatpush1.msra.mxu0 %v57
    %196 = vmatprep.subr.mxu0 0.0
    %197 = vmatpush1.msra.mxu0 %v58
    %198 = vmatprep.subr.mxu0 0.0
    %199 = vmatpush1.msra.mxu0 0.0
    %200 = vmatprep.subr.mxu0 0.0
    %201 = vmatpush1.msra.mxu0 0.0
    %202 = vmatprep.subr.mxu0 0.0
    %203 = vmatpush1.msra.mxu0 0.0
    %204 = vmatprep.subr.mxu0 0.0
    %205 = vmatpush1.msra.mxu0 0.0
    %206 = vmatprep.subr.mxu0 0.0
    %207 = vmatpush1.msra.mxu0 0.0
    %208 = vmatprep.subr.mxu0 0.0
    %209 = vmatpush1.msra.mxu0 0.0
    %210 = vmatprep.subr.mxu0 0.0
    %211 = vmatpush1.msra.mxu0 0.0
    %212 = vmatprep.subr.mxu0 0.0
    %213 = vmatpush1.msra.mxu0 0.0
    %214 = vmatprep.subr.mxu0 0.0
    %215 = vmatpush1.msra.mxu0 0.0
    %216 = vmatprep.subr.mxu0 0.0
    %217 = vmatpush1.msra.mxu0 0.0
    %218 = vmatprep.subr.mxu0 0.0
    %219 = vmatpush1.msra.mxu0 0.0
    %220 = vmatprep.subr.mxu0 0.0
    %221 = vmatpush1.msra.mxu0 0.0
    %222 = vmatprep.subr.mxu0 0.0
    %223 = vmatpush1.msra.mxu0 0.0
    %224 = vmatprep.subr.mxu0 0.0
    %225 = vmatpush1.msra.mxu0 0.0
    %226 = vmatprep.subr.mxu0 0.0
    %227 = vmatpush1.msra.mxu0 0.0
    %228 = vmatprep.subr.mxu0 0.0
    %229 = vmatpush1.msra.mxu0 0.0
    %230 = vmatprep.mubr.f32.mxu0 0.0
    %231 = vmatmul.mubr.f32.gmra.mrb[0].mxu0 %v165
    %v232 = vpop.f32.mrb[0].mxu0
    %v233 = vadd.f32 0.0, %v232
    %v234 = vpop.f32.mrb[0].mxu0
    %235 = vdwg.mxu0
    %v236 = vmax.f32 %v233, 0.0
    %237 = vmatprep.subr.mxu0 0.0
    %238 = vmatpush1.msra.mxu0 %v59
    %239 = vmatprep.subr.mxu0 0.0
    %240 = vmatpush1.msra.mxu0 %v60
    %241 = vmatprep.subr.mxu0 0.0
    %242 = vmatpush1.msra.mxu0 %v61
    %243 = vmatprep.subr.mxu0 0.0
    %244 = vmatpush1.msra.mxu0 %v62
    %245 = vmatprep.subr.mxu0 0.0
    %246 = vmatpush1.msra.mxu0 %v63
    %247 = vmatprep.subr.mxu0 0.0
    %248 = vmatpush1.msra.mxu0 %v64
    %249 = vmatprep.subr.mxu0 0.0
    %250 = vmatpush1.msra.mxu0 %v65
    %251 = vmatprep.subr.mxu0 0.0
    %252 = vmatpush1.msra.mxu0 %v66
    %253 = vmatprep.subr.mxu0 0.0
    %254 = vmatpush1.msra.mxu0 %v67
    %255 = vmatprep.subr.mxu0 0.0
    %256 = vmatpush1.msra.mxu0 %v68
    %257 = vmatprep.subr.mxu0 0.0
    %258 = vmatpush1.msra.mxu0 %v69
    %259 = vmatprep.subr.mxu0 0.0
    %260 = vmatpush1.msra.mxu0 %v70
    %261 = vmatprep.subr.mxu0 0.0
    %262 = vmatpush1.msra.mxu0 %v71
    %263 = vmatprep.subr.mxu0 0.0
    %264 = vmatpush1.msra.mxu0 %v72
    %265 = vmatprep.subr.mxu0 0.0
    %266 = vmatpush1.msra.mxu0 %v73
    %267 = vmatprep.subr.mxu0 0.0
    %268 = vmatpush1.msra.mxu0 %v74
    %269 = vmatprep.subr.mxu0 0.0
    %270 = vmatpush1.msra.mxu0 0.0
    %271 = vmatprep.subr.mxu0 0.0
    %272 = vmatpush1.msra.mxu0 0.0
    %273 = vmatprep.subr.mxu0 0.0
    %274 = vmatpush1.msra.mxu0 0.0
    %275 = vmatprep.subr.mxu0 0.0
    %276 = vmatpush1.msra.mxu0 0.0
    %277 = vmatprep.subr.mxu0 0.0
    %278 = vmatpush1.msra.mxu0 0.0
    %279 = vmatprep.subr.mxu0 0.0
    %280 = vmatpush1.msra.mxu0 0.0
    %281 = vmatprep.subr.mxu0 0.0
    %282 = vmatpush1.msra.mxu0 0.0
    %283 = vmatprep.subr.mxu0 0.0
    %284 = vmatpush1.msra.mxu0 0.0
    %285 = vmatprep.subr.mxu0 0.0
    %286 = vmatpush1.msra.mxu0 0.0
    %287 = vmatprep.subr.mxu0 0.0
    %288 = vmatpush1.msra.mxu0 0.0
    %289 = vmatprep.subr.mxu0 0.0
    %290 = vmatpush1.msra.mxu0 0.0
    %291 = vmatprep.subr.mxu0 0.0
    %292 = vmatpush1.msra.mxu0 0.0
    %293 = vmatprep.subr.mxu0 0.0
    %294 = vmatpush1.msra.mxu0 0.0
    %295 = vmatprep.subr.mxu0 0.0
    %296 = vmatpush1.msra.mxu0 0.0
    %297 = vmatprep.subr.mxu0 0.0
    %298 = vmatpush1.msra.mxu0 0.0
    %299 = vmatprep.subr.mxu0 0.0
    %300 = vmatpush1.msra.mxu0 0.0
    %301 = vmatprep.mubr.f32.mxu0 0.0
    %302 = vmatmul.mubr.f32.gmra.mrb[0].mxu0 %v236
    %v303 = vpop.f32.mrb[0].mxu0
    %v304 = vadd.f32 0.0, %v303
    %v305 = vpop.f32.mrb[0].mxu0
    %306 = vdwg.mxu0
    %v307 = vmax.f32 %v304, 0.0
    %308 = vmatprep.subr.mxu0 0.0
    %309 = vmatpush1.msra.mxu0 %v75
    %310 = vmatprep.subr.mxu0 0.0
    %311 = vmatpush1.msra.mxu0 %v76
    %312 = vmatprep.subr.mxu0 0.0
    %313 = vmatpush1.msra.mxu0 %v77
    %314 = vmatprep.subr.mxu0 0.0
    %315 = vmatpush1.msra.mxu0 %v78
    %316 = vmatprep.subr.mxu0 0.0
    %317 = vmatpush1.msra.mxu0 %v79
    %318 = vmatprep.subr.mxu0 0.0
    %319 = vmatpush1.msra.mxu0 %v80
    %320 = vmatprep.subr.mxu0 0.0
    %321 = vmatpush1.msra.mxu0 %v81
    %322 = vmatprep.subr.mxu0 0.0
    %323 = vmatpush1.msra.mxu0 %v82
    %324 = vmatprep.subr.mxu0 0.0
    %325 = vmatpush1.msra.mxu0 %v83
    %326 = vmatprep.subr.mxu0 0.0
    %327 = vmatpush1.msra.mxu0 %v84
    %328 = vmatprep.subr.mxu0 0.0
    %329 = vmatpush1.msra.mxu0 %v85
    %330 = vmatprep.subr.mxu0 0.0
    %331 = vmatpush1.msra.mxu0 %v86
    %332 = vmatprep.subr.mxu0 0.0
    %333 = vmatpush1.msra.mxu0 %v87
    %334 = vmatprep.subr.mxu0 0.0
    %335 = vmatpush1.msra.mxu0 %v88
    %336 = vmatprep.subr.mxu0 0.0
    %337 = vmatpush1.msra.mxu0 %v89
    %338 = vmatprep.subr.mxu0 0.0
    %339 = vmatpush1.msra.mxu0 %v90
    %340 = vmatprep.subr.mxu0 0.0
    %341 = vmatpush1.msra.mxu0 0.0
    %342 = vmatprep.subr.mxu0 0.0
    %343 = vmatpush1.msra.mxu0 0.0
    %344 = vmatprep.subr.mxu0 0.0
    %345 = vmatpush1.msra.mxu0 0.0
    %346 = vmatprep.subr.mxu0 0.0
    %347 = vmatpush1.msra.mxu0 0.0
    %348 = vmatprep.subr.mxu0 0.0
    %349 = vmatpush1.msra.mxu0 0.0
    %350 = vmatprep.subr.mxu0 0.0
    %351 = vmatpush1.msra.mxu0 0.0
    %352 = vmatprep.subr.mxu0 0.0
    %353 = vmatpush1.msra.mxu0 0.0
    %354 = vmatprep.subr.mxu0 0.0
    %355 = vmatpush1.msra.mxu0 0.0
    %356 = vmatprep.subr.mxu0 0.0
    %357 = vmatpush1.msra.mxu0 0.0
    %358 = vmatprep.subr.mxu0 0.0
    %359 = vmatpush1.msra.mxu0 0.0
    %360 = vmatprep.subr.mxu0 0.0
    %361 = vmatpush1.msra.mxu0 0.0
    %362 = vmatprep.subr.mxu0 0.0
    %363 = vmatpush1.msra.mxu0 0.0
    %364 = vmatprep.subr.mxu0 0.0
    %365 = vmatpush1.msra.mxu0 0.0
    %366 = vmatprep.subr.mxu0 0.0
    %367 = vmatpush1.msra.mxu0 0.0
    %368 = vmatprep.subr.mxu0 0.0
    %369 = vmatpush1.msra.mxu0 0.0
    %370 = vmatprep.subr.mxu0 0.0
    %371 = vmatpush1.msra.mxu0 0.0
    %372 = vmatprep.mubr.f32.mxu0 0.0
    %373 = vmatmul.mubr.f32.gmra.mrb[0].mxu0 %v307
    %v374 = vpop.f32.mrb[0].mxu0
    %v375 = vadd.f32 0.0, %v374
    %v376 = vpop.f32.mrb[0].mxu0
    %377 = vdwg.mxu0
    %v378 = vlaneseq
    %v379 = vand.u32 %v378, 127
    %vm380 = vcmp.lt.s32.totalorder %v379, 10
    %v381 = vsel %vm380, %v375, -inf
    %382 = vmax.xlane.f32.xlu0 %v381
    %v383 = vpop.xlane.xlu0 %382
    %v384 = vsub.f32 %v381, %v383
    %v385 = vmul.f32 %v384, 1.442695
    %v386 = vpow.pop %v385
    %387 = vadd.xlane.f32.xlu0 %v386
    %v388 = vpop.xlane.xlu0 %387
    %v389 = vlog2.pop %v388
    %v390 = vmul.f32 %v389, 0.6931472
    %v391 = vsub.f32 %v384, %v390
    %vm392 = vcmask 80896
    %393 = vst.msk [vmem:[#allocation7] sm:$0xff] %vm392, %v391
    // Predicated region
    $region18: #{tpu_custom_call.1} parent=1 // pred_check
      _
    $region19: #{tpu_custom_call.1} parent=1 // pred_check_branch
      %395 = sbr.rel (0) target = $region21
    $region20: #{tpu_custom_call.1} parent=1 // pred_region
      %s397 = ssub.s32 128, 128
      %398 = vsyncadd [#allocation4], %s397
      %s400 = sshll.u32 [#allocation7], 4
      %s401 = int_to_ptr.vmem [resolvable:$true] %s400
      %403 = dma.vmem_to_hbm [thread:$0]  %s401, 128, %s2, [#allocation4]
    $region21: #{tpu_custom_call.1} parent=1 // pred_fallthru
      _
    // Predicated region
    $region22: #{tpu_custom_call.1} parent=1 // pred_check
      _
    $region23: #{tpu_custom_call.1} parent=1 // pred_check_branch
      %405 = sbr.rel (0) target = $region25
    $region24: #{tpu_custom_call.1} parent=1 // pred_region
      %406 = dma.done [#allocation4], 128
    $region25: #{tpu_custom_call.1} parent=1 // pred_fallthru
      _
    %407 = vsyncpa [#allocation3], 1
    %408 = vsyncpa [#allocation6], 1
    %409 = vsyncpa [#allocation4], 1

</llo_original>
